<compile_context>
chip_gen: v6e
topology: v6e:2x2x1
jax: 0.10.0
libtpu: 0.0.40
codegen_flags: <defaults>
</compile_context>

<pallas_src>
import jax
import jax.numpy as jnp
from jax.experimental import pallas as pl
from jax.experimental.pallas import tpu as pltpu

D_IN, D_H1, D_H2, D_OUT = 361, 512, 128, 2
D_IN_PAD = 384          # 361 -> 3*128 (clean lane/sublane tiling for x and w1)
D_OUT_PAD = 128         # 2   -> 128   (lane-dense fc3 matmul + output store)
NEG_MASK = -1e9         # bias for padded logit columns -> exp() underflows to 0
TM_MAX = 256            # batch tile (fills the 256-wide MXU on v6e/v7x)


def _round_up(x, m):
    return (x + m - 1) // m * m


def mlp_kernel(x_ref, w1_ref, b1_ref, w2_ref, b2_ref, w3_ref, b3_ref, o_ref):
    # fc1 + ReLU  (bf16 MXU inputs, f32 accumulation / VPU math)
    h1 = jnp.dot(x_ref[...], w1_ref[...], preferred_element_type=jnp.float32)
    h1 = jnp.maximum(h1 + b1_ref[...], 0.0)
    # fc2 + ReLU
    h2 = jnp.dot(h1.astype(jnp.bfloat16), w2_ref[...],
                 preferred_element_type=jnp.float32)
    h2 = jnp.maximum(h2 + b2_ref[...], 0.0)
    # fc3 (padded to 128 output columns; padded columns carry -1e9 bias)
    logits = jnp.dot(h2.astype(jnp.bfloat16), w3_ref[...],
                     preferred_element_type=jnp.float32) + b3_ref[...]
    # softmax over the lane axis; padded columns contribute exactly 0
    m = jnp.max(logits, axis=-1, keepdims=True)
    e = jnp.exp(logits - m)
    denom = jnp.sum(e, axis=-1, keepdims=True)
    o_ref[...] = e * pl.reciprocal(denom, approx=True)


def mlp_forward(x, packed_params):
    """x: (19,19) single board or (B,19,19) batch. Returns (B, 2) probabilities."""
    w1, b1, w2, b2, w3, b3 = packed_params
    if x.ndim == 2:
        x = x[None]
    B = x.shape[0]
    xf = x.reshape(B, D_IN).astype(jnp.float32)
    xf = jnp.pad(xf, ((0, 0), (0, D_IN_PAD - D_IN)))          # pad features
    tm = TM_MAX if B >= TM_MAX else _round_up(B, 8)
    Bp = _round_up(B, tm)
    xf = jnp.pad(xf, ((0, Bp - B), (0, 0))).astype(jnp.bfloat16)  # pad batch

    out = pl.pallas_call(
        mlp_kernel,
        out_shape=jax.ShapeDtypeStruct((Bp, D_OUT_PAD), jnp.float32),
        grid=(Bp // tm,),
        in_specs=[
            pl.BlockSpec((tm, D_IN_PAD), lambda i: (i, 0)),       # x tile streams
            pl.BlockSpec((D_IN_PAD, D_H1), lambda i: (0, 0)),     # weights resident
            pl.BlockSpec((1, D_H1), lambda i: (0, 0)),
            pl.BlockSpec((D_H1, D_H2), lambda i: (0, 0)),
            pl.BlockSpec((1, D_H2), lambda i: (0, 0)),
            pl.BlockSpec((D_H2, D_OUT_PAD), lambda i: (0, 0)),
            pl.BlockSpec((1, D_OUT_PAD), lambda i: (0, 0)),
        ],
        out_specs=pl.BlockSpec((tm, D_OUT_PAD), lambda i: (i, 0)),
        compiler_params=pltpu.CompilerParams(
            dimension_semantics=("parallel",)),
    )(xf, w1, b1, w2, b2, w3, b3)
    return out[:B, :D_OUT]


def init_params(key):
    """PyTorch-Linear-style uniform(-1/sqrt(fan_in), 1/sqrt(fan_in)), stored (in, out)."""
    ks = jax.random.split(key, 6)

    def lin(kw, kb, fan_in, fan_out):
        bound = 1.0 / jnp.sqrt(jnp.float32(fan_in))
        w = jax.random.uniform(kw, (fan_in, fan_out), jnp.float32, -bound, bound)
        b = jax.random.uniform(kb, (1, fan_out), jnp.float32, -bound, bound)
        return w, b

    w1, b1 = lin(ks[0], ks[1], D_IN, D_H1)
    w2, b2 = lin(ks[2], ks[3], D_H1, D_H2)
    w3, b3 = lin(ks[4], ks[5], D_H2, D_OUT)
    return (w1, b1, w2, b2, w3, b3)


def pack_params(params):
    """Pad ragged dims and cast weights to bf16 (biases stay f32)."""
    w1, b1, w2, b2, w3, b3 = params
    w1p = jnp.pad(w1, ((0, D_IN_PAD - D_IN), (0, 0))).astype(jnp.bfloat16)
    w2p = w2.astype(jnp.bfloat16)
    w3p = jnp.pad(w3, ((0, 0), (0, D_OUT_PAD - D_OUT))).astype(jnp.bfloat16)
    b3p = jnp.concatenate(
        [b3, jnp.full((1, D_OUT_PAD - D_OUT), NEG_MASK, jnp.float32)], axis=1)
    return (w1p, b1, w2p, b2, w3p, b3p)


def mlp_reference(x, params):
    """Pure-JAX reference following the same bf16 rounding of matmul operands."""
    w1, b1, w2, b2, w3, b3 = params
    if x.ndim == 2:
        x = x[None]
    B = x.shape[0]
    xf = x.reshape(B, D_IN).astype(jnp.float32)

    def bf(a):
        return a.astype(jnp.bfloat16).astype(jnp.float32)

    h1 = jnp.maximum(bf(xf) @ bf(w1) + b1, 0.0)
    h2 = jnp.maximum(bf(h1) @ bf(w2) + b2, 0.0)
    logits = bf(h2) @ bf(w3) + b3
    return jax.nn.softmax(logits, axis=1)


if __name__ == "__main__":
    key = jax.random.PRNGKey(0)
    k_param, k_x = jax.random.split(key)
    params = init_params(k_param)
    packed = pack_params(params)

    # Small batch of 19x19 boards (each flattens to 361 features, matching fc1).
    B = 8
    x = jax.random.normal(k_x, (B, 19, 19), jnp.float32)

    out = mlp_forward(x, packed)
    out = jax.block_until_ready(out)

    ref = mlp_reference(x, params)
    assert out.shape == (B, D_OUT)
    # bf16 matmul inputs + approx EUP reciprocal -> compare at a few 1e-3 abs.
    assert jnp.allclose(out, ref, atol=5e-3, rtol=5e-3)
    assert jnp.allclose(jnp.sum(out, axis=1), 1.0, atol=5e-3)
    print("KERNEL_OK")
</pallas_src>

<mosaic_0001>
module attributes {stable_mosaic.version = 11 : i64} {
  func.func @mlp_kernel(%arg0: i32, %arg1: memref<8x384xbf16, #tpu.memory_space<vmem>>, %arg2: memref<384x512xbf16, #tpu.memory_space<vmem>>, %arg3: memref<1x512xf32, #tpu.memory_space<vmem>>, %arg4: memref<512x128xbf16, #tpu.memory_space<vmem>>, %arg5: memref<1x128xf32, #tpu.memory_space<vmem>>, %arg6: memref<128x128xbf16, #tpu.memory_space<vmem>>, %arg7: memref<1x128xf32, #tpu.memory_space<vmem>>, %arg8: memref<8x128xf32, #tpu.memory_space<vmem>>) attributes {dimension_semantics = [#tpu.dimension_semantics<parallel>], iteration_bounds = array<i64: 1>, scalar_prefetch = 0 : i64, scratch_operands = 0 : i64, tpu.core_type = #tpu.core_type<tc>, window_params = [{transform_indices = @transform_0, window_bounds = array<i64: 8, 384>}, {pipeline_mode = #tpu.pipeline_mode<synchronous>, transform_indices = @transform_1, window_bounds = array<i64: 384, 512>}, {pipeline_mode = #tpu.pipeline_mode<synchronous>, transform_indices = @transform_2, window_bounds = array<i64: 1, 512>}, {pipeline_mode = #tpu.pipeline_mode<synchronous>, transform_indices = @transform_3, window_bounds = array<i64: 512, 128>}, {pipeline_mode = #tpu.pipeline_mode<synchronous>, transform_indices = @transform_4, window_bounds = array<i64: 1, 128>}, {pipeline_mode = #tpu.pipeline_mode<synchronous>, transform_indices = @transform_5, window_bounds = array<i64: 128, 128>}, {pipeline_mode = #tpu.pipeline_mode<synchronous>, transform_indices = @transform_6, window_bounds = array<i64: 1, 128>}, {transform_indices = @transform_7, window_bounds = array<i64: 8, 128>}]} {
    %c0 = arith.constant 0 : index
    %c0_0 = arith.constant 0 : index
    %0 = vector.load %arg1[%c0, %c0_0] : memref<8x384xbf16, #tpu.memory_space<vmem>>, vector<8x384xbf16>
    %c0_1 = arith.constant 0 : index
    %c0_2 = arith.constant 0 : index
    %1 = vector.load %arg2[%c0_1, %c0_2] : memref<384x512xbf16, #tpu.memory_space<vmem>>, vector<384x512xbf16>
    %cst = arith.constant dense<0.000000e+00> : vector<8x512xf32>
    %2 = tpu.matmul %0, %1, %cst {dimension_numbers = #tpu.dot_dimension_numbers<[1], [0], [0], [1], [0, 0, 1, 1], [], []>} : vector<8x384xbf16>, vector<384x512xbf16>, vector<8x512xf32> -> vector<8x512xf32>
    %c0_3 = arith.constant 0 : index
    %c0_4 = arith.constant 0 : index
    %3 = vector.load %arg3[%c0_3, %c0_4] : memref<1x512xf32, #tpu.memory_space<vmem>>, vector<1x512xf32>
    %4 = vector.broadcast %3 : vector<1x512xf32> to vector<8x512xf32>
    %5 = arith.addf %2, %4 : vector<8x512xf32>
    %cst_5 = arith.constant 0.000000e+00 : f32
    %6 = vector.broadcast %cst_5 : f32 to vector<8x512xf32>
    %7 = arith.maximumf %5, %6 : vector<8x512xf32>
    %8 = arith.truncf %7 : vector<8x512xf32> to vector<8x512xbf16>
    %c0_6 = arith.constant 0 : index
    %c0_7 = arith.constant 0 : index
    %9 = vector.load %arg4[%c0_6, %c0_7] : memref<512x128xbf16, #tpu.memory_space<vmem>>, vector<512x128xbf16>
    %cst_8 = arith.constant dense<0.000000e+00> : vector<8x128xf32>
    %10 = tpu.matmul %8, %9, %cst_8 {dimension_numbers = #tpu.dot_dimension_numbers<[1], [0], [0], [1], [0, 0, 1, 1], [], []>} : vector<8x512xbf16>, vector<512x128xbf16>, vector<8x128xf32> -> vector<8x128xf32>
    %c0_9 = arith.constant 0 : index
    %c0_10 = arith.constant 0 : index
    %11 = vector.load %arg5[%c0_9, %c0_10] : memref<1x128xf32, #tpu.memory_space<vmem>>, vector<1x128xf32>
    %12 = vector.broadcast %11 : vector<1x128xf32> to vector<8x128xf32>
    %13 = arith.addf %10, %12 : vector<8x128xf32>
    %cst_11 = arith.constant 0.000000e+00 : f32
    %14 = vector.broadcast %cst_11 : f32 to vector<8x128xf32>
    %15 = arith.maximumf %13, %14 : vector<8x128xf32>
    %16 = arith.truncf %15 : vector<8x128xf32> to vector<8x128xbf16>
    %c0_12 = arith.constant 0 : index
    %c0_13 = arith.constant 0 : index
    %17 = vector.load %arg6[%c0_12, %c0_13] : memref<128x128xbf16, #tpu.memory_space<vmem>>, vector<128x128xbf16>
    %cst_14 = arith.constant dense<0.000000e+00> : vector<8x128xf32>
    %18 = tpu.matmul %16, %17, %cst_14 {dimension_numbers = #tpu.dot_dimension_numbers<[1], [0], [0], [1], [0, 0, 1, 1], [], []>} : vector<8x128xbf16>, vector<128x128xbf16>, vector<8x128xf32> -> vector<8x128xf32>
    %c0_15 = arith.constant 0 : index
    %c0_16 = arith.constant 0 : index
    %19 = vector.load %arg7[%c0_15, %c0_16] : memref<1x128xf32, #tpu.memory_space<vmem>>, vector<1x128xf32>
    %20 = vector.broadcast %19 : vector<1x128xf32> to vector<8x128xf32>
    %21 = arith.addf %18, %20 : vector<8x128xf32>
    %cst_17 = arith.constant dense<0xFF800000> : vector<8xf32>
    %22 = vector.multi_reduction <maximumf>, %21, %cst_17 [1] : vector<8x128xf32> to vector<8xf32>
    %23 = vector.shape_cast %22 : vector<8xf32> to vector<8x1xf32>
    %24 = vector.broadcast %23 : vector<8x1xf32> to vector<8x128xf32>
    %25 = arith.subf %21, %24 : vector<8x128xf32>
    %26 = math.exp %25 : vector<8x128xf32>
    %cst_18 = arith.constant dense<0.000000e+00> : vector<8xf32>
    %27 = vector.multi_reduction <add>, %26, %cst_18 [1] : vector<8x128xf32> to vector<8xf32>
    %28 = vector.shape_cast %27 : vector<8xf32> to vector<8x1xf32>
    %29 = tpu.reciprocal %28 {approx = true} : vector<8x1xf32> -> vector<8x1xf32>
    %30 = vector.broadcast %29 : vector<8x1xf32> to vector<8x128xf32>
    %31 = arith.mulf %26, %30 : vector<8x128xf32>
    %c0_19 = arith.constant 0 : index
    %c0_20 = arith.constant 0 : index
    %32 = vector.load %arg8[%c0_19, %c0_20] : memref<8x128xf32, #tpu.memory_space<vmem>>, vector<8x128xf32>
    tpu.vector_store %arg8[%c0_19, %c0_20], %31 {strides = array<i32>} : memref<8x128xf32, #tpu.memory_space<vmem>>, vector<8x128xf32>,
    return
  }
  func.func @transform_0(%arg0: i32) -> (i32, i32) {
    %c0_i32 = arith.constant 0 : i32
    %c0_i32_0 = arith.constant 0 : i32
    return %arg0, %c0_i32 : i32, i32
  }
  func.func @transform_1(%arg0: i32) -> (i32, i32) {
    %c0_i32 = arith.constant 0 : i32
    %c0_i32_0 = arith.constant 0 : i32
    %c0_i32_1 = arith.constant 0 : i32
    return %c0_i32, %c0_i32_0 : i32, i32
  }
  func.func @transform_2(%arg0: i32) -> (i32, i32) {
    %c0_i32 = arith.constant 0 : i32
    %c0_i32_0 = arith.constant 0 : i32
    %c0_i32_1 = arith.constant 0 : i32
    return %c0_i32, %c0_i32_0 : i32, i32
  }
  func.func @transform_3(%arg0: i32) -> (i32, i32) {
    %c0_i32 = arith.constant 0 : i32
    %c0_i32_0 = arith.constant 0 : i32
    %c0_i32_1 = arith.constant 0 : i32
    return %c0_i32, %c0_i32_0 : i32, i32
  }
  func.func @transform_4(%arg0: i32) -> (i32, i32) {
    %c0_i32 = arith.constant 0 : i32
    %c0_i32_0 = arith.constant 0 : i32
    %c0_i32_1 = arith.constant 0 : i32
    return %c0_i32, %c0_i32_0 : i32, i32
  }
  func.func @transform_5(%arg0: i32) -> (i32, i32) {
    %c0_i32 = arith.constant 0 : i32
    %c0_i32_0 = arith.constant 0 : i32
    %c0_i32_1 = arith.constant 0 : i32
    return %c0_i32, %c0_i32_0 : i32, i32
  }
  func.func @transform_6(%arg0: i32) -> (i32, i32) {
    %c0_i32 = arith.constant 0 : i32
    %c0_i32_0 = arith.constant 0 : i32
    %c0_i32_1 = arith.constant 0 : i32
    return %c0_i32, %c0_i32_0 : i32, i32
  }
  func.func @transform_7(%arg0: i32) -> (i32, i32) {
    %c0_i32 = arith.constant 0 : i32
    %c0_i32_0 = arith.constant 0 : i32
    return %arg0, %c0_i32 : i32, i32
  }
}

</mosaic_0001>

<llo_original>
// kernel: tpu_custom_call.1
$region0: #{tpu_custom_call.1}
  #allocation0 [shape = 'u32[]', space=smem, size = 0x4, offset = 0x4, fixed_abs, tag = 'smem constant byte address 0x4 - core index']
  #allocation1 [shape = 'u32[144,128]{1,0:T(1,128)}', space=vmem, size = 0x12000, scoped, tag = 'internal scratch']
  %s0 = inlined_call_operand.hbm [shape: bf16[8,384], index: 0, kind: input, shape index: {}]
  %s1 = inlined_call_operand.hbm [shape: bf16[384,512], index: 1, kind: input, shape index: {}]
  %s2 = inlined_call_operand.hbm [shape: f32[1,512], index: 2, kind: input, shape index: {}]
  %s3 = inlined_call_operand.hbm [shape: bf16[512,128], index: 3, kind: input, shape index: {}]
  %s4 = inlined_call_operand.vmem [shape: f32[1,128], index: 4, kind: input, shape index: {}]
  %s5 = inlined_call_operand.hbm [shape: bf16[128,128], index: 5, kind: input, shape index: {}]
  %s6 = inlined_call_operand.vmem [shape: f32[1,128], index: 6, kind: input, shape index: {}]
  %s7 = inlined_call_operand.hbm [shape: f32[8,128], index: 7, kind: output, shape index: {}]
  %s8 = sld [smem:[#allocation0]]
  $region58: #{tpu_custom_call.1} parent=0
    _
  %s10 = ssub.s32 1, %s8
  %s11 = scalar_select 0, %s10, %s8
  $region1: #{tpu_custom_call.1} parent=0
    #allocation2 [shape = 'u8[6144]{0}', space=vmem, size = 0x1800, scoped, tag = 'input window, operand 0, single buffered']
    #allocation3 [shape = 's32[1]{0}', space=sflag, size = 0x4, scoped, tag = 'scoped memory for tpu_custom_call.1']
    #allocation4 [shape = 's32[1]{0}', space=sflag, size = 0x4, scoped, tag = 'scoped memory for tpu_custom_call.1']
    #allocation5 [shape = 'u8[393216]{0}', space=vmem, size = 0x60000, scoped, tag = 'input window, operand 1, single buffered']
    #allocation6 [shape = 's32[1]{0}', space=sflag, size = 0x4, scoped, tag = 'scoped memory for tpu_custom_call.1']
    #allocation7 [shape = 'u8[2048]{0}', space=vmem, size = 0x800, scoped, tag = 'input window, operand 2, single buffered']
    #allocation8 [shape = 'u8[131072]{0}', space=vmem, size = 0x20000, scoped, tag = 'input window, operand 3, single buffered']
    #allocation9 [shape = 's32[1]{0}', space=sflag, size = 0x4, scoped, tag = 'scoped memory for tpu_custom_call.1']
    #allocation10 [shape = 'u8[32768]{0}', space=vmem, size = 0x8000, scoped, tag = 'input window, operand 5, single buffered']
    #allocation11 [shape = 'u8[4096]{0}', space=vmem, size = 0x1000, scoped, tag = 'output window, operand 0, single buffered']
    %12 = vsyncpa [#allocation3], 0
    %13 = vsyncpa [#allocation6], 0
    %14 = vsyncpa [#allocation9], 0
    %15 = vsyncpa [#allocation4], 0
    // Predicated region
    $region2: #{tpu_custom_call.1} parent=1 // pred_check
      _
    $region3: #{tpu_custom_call.1} parent=1 // pred_check_branch
      %17 = sbr.rel (0) target = $region5
    $region4: #{tpu_custom_call.1} parent=1 // pred_region
      %s19 = ssub.s32 192, 192
      %20 = vsyncadd [#allocation3], %s19
      %s22 = sshll.u32 [#allocation2], 4
      %s23 = int_to_ptr.vmem [resolvable:$true] %s22
      %25 = dma.hbm_to_vmem [thread:$0]  %s0, 192, %s23, [#allocation3]
    $region5: #{tpu_custom_call.1} parent=1 // pred_fallthru
      _
    // Predicated region
    $region6: #{tpu_custom_call.1} parent=1 // pred_check
      _
    $region7: #{tpu_custom_call.1} parent=1 // pred_check_branch
      %27 = sbr.rel (0) target = $region9
    $region8: #{tpu_custom_call.1} parent=1 // pred_region
      %s29 = ssub.s32 12288, 12288
      %30 = vsyncadd [#allocation6], %s29
      %s31 = sshll.u32 [#allocation5], 4
      %s32 = int_to_ptr.vmem [resolvable:$true] %s31
      %37 = dma.hbm_to_vmem [thread:$0]  %s1, 12288, %s32, [#allocation6], 256, 256, 16
    $region9: #{tpu_custom_call.1} parent=1 // pred_fallthru
      _
    // Predicated region
    $region10: #{tpu_custom_call.1} parent=1 // pred_check
      _
    $region11: #{tpu_custom_call.1} parent=1 // pred_check_branch
      %39 = sbr.rel (0) target = $region13
    $region12: #{tpu_custom_call.1} parent=1 // pred_region
      %s41 = ssub.s32 64, 64
      %42 = vsyncadd [#allocation6], %s41
      %s44 = sshll.u32 [#allocation7], 4
      %s45 = int_to_ptr.vmem [resolvable:$true] %s44
      %47 = dma.hbm_to_vmem [thread:$0]  %s2, 64, %s45, [#allocation6]
    $region13: #{tpu_custom_call.1} parent=1 // pred_fallthru
      _
    // Predicated region
    $region14: #{tpu_custom_call.1} parent=1 // pred_check
      _
    $region15: #{tpu_custom_call.1} parent=1 // pred_check_branch
      %49 = sbr.rel (0) target = $region17
    $region16: #{tpu_custom_call.1} parent=1 // pred_region
      %s51 = ssub.s32 4096, 4096
      %52 = vsyncadd [#allocation9], %s51
      %s53 = sshll.u32 [#allocation8], 4
      %s54 = int_to_ptr.vmem [resolvable:$true] %s53
      %59 = dma.hbm_to_vmem [thread:$0]  %s3, 4096, %s54, [#allocation9], 64, 64, 4
    $region17: #{tpu_custom_call.1} parent=1 // pred_fallthru
      _
    // Predicated region
    $region18: #{tpu_custom_call.1} parent=1 // pred_check
      _
    $region19: #{tpu_custom_call.1} parent=1 // pred_check_branch
      %61 = sbr.rel (0) target = $region21
    $region20: #{tpu_custom_call.1} parent=1 // pred_region
      _
    $region21: #{tpu_custom_call.1} parent=1 // pred_fallthru
      _
    // Predicated region
    $region22: #{tpu_custom_call.1} parent=1 // pred_check
      _
    $region23: #{tpu_custom_call.1} parent=1 // pred_check_branch
      %63 = sbr.rel (0) target = $region25
    $region24: #{tpu_custom_call.1} parent=1 // pred_region
      %s65 = ssub.s32 1024, 1024
      %66 = vsyncadd [#allocation9], %s65
      %s67 = sshll.u32 [#allocation10], 4
      %s68 = int_to_ptr.vmem [resolvable:$true] %s67
      %73 = dma.hbm_to_vmem [thread:$0]  %s5, 1024, %s68, [#allocation9], 64, 64, 4
    $region25: #{tpu_custom_call.1} parent=1 // pred_fallthru
      _
    // Predicated region
    $region26: #{tpu_custom_call.1} parent=1 // pred_check
      _
    $region27: #{tpu_custom_call.1} parent=1 // pred_check_branch
      %75 = sbr.rel (0) target = $region29
    $region28: #{tpu_custom_call.1} parent=1 // pred_region
      _
    $region29: #{tpu_custom_call.1} parent=1 // pred_fallthru
      _
    // Predicated region
    $region30: #{tpu_custom_call.1} parent=1 // pred_check
      _
    $region31: #{tpu_custom_call.1} parent=1 // pred_check_branch
      %77 = sbr.rel (0) target = $region33
    $region32: #{tpu_custom_call.1} parent=1 // pred_region
      %78 = dma.done [#allocation3], 192
    $region33: #{tpu_custom_call.1} parent=1 // pred_fallthru
      _
    // Predicated region
    $region34: #{tpu_custom_call.1} parent=1 // pred_check
      _
    $region35: #{tpu_custom_call.1} parent=1 // pred_check_branch
      %80 = sbr.rel (0) target = $region37
    $region36: #{tpu_custom_call.1} parent=1 // pred_region
      %81 = dma.done [#allocation6], 12288
    $region37: #{tpu_custom_call.1} parent=1 // pred_fallthru
      _
    // Predicated region
    $region38: #{tpu_custom_call.1} parent=1 // pred_check
      _
    $region39: #{tpu_custom_call.1} parent=1 // pred_check_branch
      %83 = sbr.rel (0) target = $region41
    $region40: #{tpu_custom_call.1} parent=1 // pred_region
      %84 = dma.done [#allocation6], 64
    $region41: #{tpu_custom_call.1} parent=1 // pred_fallthru
      _
    // Predicated region
    $region42: #{tpu_custom_call.1} parent=1 // pred_check
      _
    $region43: #{tpu_custom_call.1} parent=1 // pred_check_branch
      %86 = sbr.rel (0) target = $region45
    $region44: #{tpu_custom_call.1} parent=1 // pred_region
      %87 = dma.done [#allocation9], 4096
    $region45: #{tpu_custom_call.1} parent=1 // pred_fallthru
      _
    // Predicated region
    $region46: #{tpu_custom_call.1} parent=1 // pred_check
      _
    $region47: #{tpu_custom_call.1} parent=1 // pred_check_branch
      %89 = sbr.rel (0) target = $region49
    $region48: #{tpu_custom_call.1} parent=1 // pred_region
      %90 = dma.done [#allocation9], 1024
    $region49: #{tpu_custom_call.1} parent=1 // pred_fallthru
      _
    %v92 = vld [vmem:[#allocation2] sm:$0xff]
    %v93 = vld [vmem:[#allocation2 + $0x8] sm:$0xf]
    %v94 = vld [vmem:[#allocation5] sm:$0xff]
    %v95 = vld [vmem:[#allocation5 + $0x8] sm:$0xff]
    %v96 = vld [vmem:[#allocation5 + $0x10] sm:$0xff]
    %v97 = vld [vmem:[#allocation5 + $0x18] sm:$0xff]
    %v98 = vld [vmem:[#allocation5 + $0x20] sm:$0xff]
    %v99 = vld [vmem:[#allocation5 + $0x28] sm:$0xff]
    %v100 = vld [vmem:[#allocation5 + $0x30] sm:$0xff]
    %v101 = vld [vmem:[#allocation5 + $0x38] sm:$0xff]
    %v102 = vld [vmem:[#allocation5 + $0x40] sm:$0xff]
    %v103 = vld [vmem:[#allocation5 + $0x48] sm:$0xff]
    %v104 = vld [vmem:[#allocation5 + $0x50] sm:$0xff]
    %v105 = vld [vmem:[#allocation5 + $0x58] sm:$0xff]
    %v106 = vld [vmem:[#allocation5 + $0x60] sm:$0xff]
    %v107 = vld [vmem:[#allocation5 + $0x68] sm:$0xff]
    %v108 = vld [vmem:[#allocation5 + $0x70] sm:$0xff]
    %v109 = vld [vmem:[#allocation5 + $0x78] sm:$0xff]
    %v110 = vld [vmem:[#allocation5 + $0x80] sm:$0xff]
    %v111 = vld [vmem:[#allocation5 + $0x88] sm:$0xff]
    %v112 = vld [vmem:[#allocation5 + $0x90] sm:$0xff]
    %v113 = vld [vmem:[#allocation5 + $0x98] sm:$0xff]
    %v114 = vld [vmem:[#allocation5 + $0xa0] sm:$0xff]
    %v115 = vld [vmem:[#allocation5 + $0xa8] sm:$0xff]
    %v116 = vld [vmem:[#allocation5 + $0xb0] sm:$0xff]
    %v117 = vld [vmem:[#allocation5 + $0xb8] sm:$0xff]
    %v118 = vld [vmem:[#allocation5 + $0xc0] sm:$0xff]
    %v119 = vld [vmem:[#allocation5 + $0xc8] sm:$0xff]
    %v120 = vld [vmem:[#allocation5 + $0xd0] sm:$0xff]
    %v121 = vld [vmem:[#allocation5 + $0xd8] sm:$0xff]
    %v122 = vld [vmem:[#allocation5 + $0xe0] sm:$0xff]
    %v123 = vld [vmem:[#allocation5 + $0xe8] sm:$0xff]
    %v124 = vld [vmem:[#allocation5 + $0xf0] sm:$0xff]
    %v125 = vld [vmem:[#allocation5 + $0xf8] sm:$0xff]
    %v126 = vld [vmem:[#allocation5 + $0x100] sm:$0xff]
    %v127 = vld [vmem:[#allocation5 + $0x108] sm:$0xff]
    %v128 = vld [vmem:[#allocation5 + $0x110] sm:$0xff]
    %v129 = vld [vmem:[#allocation5 + $0x118] sm:$0xff]
    %v130 = vld [vmem:[#allocation5 + $0x120] sm:$0xff]
    %v131 = vld [vmem:[#allocation5 + $0x128] sm:$0xff]
    %v132 = vld [vmem:[#allocation5 + $0x130] sm:$0xff]
    %v133 = vld [vmem:[#allocation5 + $0x138] sm:$0xff]
    %v134 = vld [vmem:[#allocation5 + $0x140] sm:$0xff]
    %v135 = vld [vmem:[#allocation5 + $0x148] sm:$0xff]
    %v136 = vld [vmem:[#allocation5 + $0x150] sm:$0xff]
    %v137 = vld [vmem:[#allocation5 + $0x158] sm:$0xff]
    %v138 = vld [vmem:[#allocation5 + $0x160] sm:$0xff]
    %v139 = vld [vmem:[#allocation5 + $0x168] sm:$0xff]
    %v140 = vld [vmem:[#allocation5 + $0x170] sm:$0xff]
    %v141 = vld [vmem:[#allocation5 + $0x178] sm:$0xff]
    %v142 = vld [vmem:[#allocation5 + $0x180] sm:$0xff]
    %v143 = vld [vmem:[#allocation5 + $0x188] sm:$0xff]
    %v144 = vld [vmem:[#allocation5 + $0x190] sm:$0xff]
    %v145 = vld [vmem:[#allocation5 + $0x198] sm:$0xff]
    %v146 = vld [vmem:[#allocation5 + $0x1a0] sm:$0xff]
    %v147 = vld [vmem:[#allocation5 + $0x1a8] sm:$0xff]
    %v148 = vld [vmem:[#allocation5 + $0x1b0] sm:$0xff]
    %v149 = vld [vmem:[#allocation5 + $0x1b8] sm:$0xff]
    %v150 = vld [vmem:[#allocation5 + $0x1c0] sm:$0xff]
    %v151 = vld [vmem:[#allocation5 + $0x1c8] sm:$0xff]
    %v152 = vld [vmem:[#allocation5 + $0x1d0] sm:$0xff]
    %v153 = vld [vmem:[#allocation5 + $0x1d8] sm:$0xff]
    %v154 = vld [vmem:[#allocation5 + $0x1e0] sm:$0xff]
    %v155 = vld [vmem:[#allocation5 + $0x1e8] sm:$0xff]
    %v156 = vld [vmem:[#allocation5 + $0x1f0] sm:$0xff]
    %v157 = vld [vmem:[#allocation5 + $0x1f8] sm:$0xff]
    %v158 = vld [vmem:[#allocation5 + $0x200] sm:$0xff]
    %v159 = vld [vmem:[#allocation5 + $0x208] sm:$0xff]
    %v160 = vld [vmem:[#allocation5 + $0x210] sm:$0xff]
    %v161 = vld [vmem:[#allocation5 + $0x218] sm:$0xff]
    %v162 = vld [vmem:[#allocation5 + $0x220] sm:$0xff]
    %v163 = vld [vmem:[#allocation5 + $0x228] sm:$0xff]
    %v164 = vld [vmem:[#allocation5 + $0x230] sm:$0xff]
    %v165 = vld [vmem:[#allocation5 + $0x238] sm:$0xff]
    %v166 = vld [vmem:[#allocation5 + $0x240] sm:$0xff]
    %v167 = vld [vmem:[#allocation5 + $0x248] sm:$0xff]
    %v168 = vld [vmem:[#allocation5 + $0x250] sm:$0xff]
    %v169 = vld [vmem:[#allocation5 + $0x258] sm:$0xff]
    %v170 = vld [vmem:[#allocation5 + $0x260] sm:$0xff]
    %v171 = vld [vmem:[#allocation5 + $0x268] sm:$0xff]
    %v172 = vld [vmem:[#allocation5 + $0x270] sm:$0xff]
    %v173 = vld [vmem:[#allocation5 + $0x278] sm:$0xff]
    %v174 = vld [vmem:[#allocation5 + $0x280] sm:$0xff]
    %v175 = vld [vmem:[#allocation5 + $0x288] sm:$0xff]
    %v176 = vld [vmem:[#allocation5 + $0x290] sm:$0xff]
    %v177 = vld [vmem:[#allocation5 + $0x298] sm:$0xff]
    %v178 = vld [vmem:[#allocation5 + $0x2a0] sm:$0xff]
    %v179 = vld [vmem:[#allocation5 + $0x2a8] sm:$0xff]
    %v180 = vld [vmem:[#allocation5 + $0x2b0] sm:$0xff]
    %v181 = vld [vmem:[#allocation5 + $0x2b8] sm:$0xff]
    %v182 = vld [vmem:[#allocation5 + $0x2c0] sm:$0xff]
    %v183 = vld [vmem:[#allocation5 + $0x2c8] sm:$0xff]
    %v184 = vld [vmem:[#allocation5 + $0x2d0] sm:$0xff]
    %v185 = vld [vmem:[#allocation5 + $0x2d8] sm:$0xff]
    %v186 = vld [vmem:[#allocation5 + $0x2e0] sm:$0xff]
    %v187 = vld [vmem:[#allocation5 + $0x2e8] sm:$0xff]
    %v188 = vld [vmem:[#allocation5 + $0x2f0] sm:$0xff]
    %v189 = vld [vmem:[#allocation5 + $0x2f8] sm:$0xff]
    %v190 = vld [vmem:[#allocation7] sm:$0xf]
    %v192 = vlaneseq
    %v193 = vshrl.u32 %v192, 7
    %v194 = vsub.s32 0, %v193
    %v195 = vrot.slane %v190, %v194
    %v196 = vlaneseq
    %v197 = vshrl.u32 %v196, 7
    %v198 = vsub.s32 1, %v197
    %v199 = vrot.slane %v190, %v198
    %v200 = vlaneseq
    %v201 = vshrl.u32 %v200, 7
    %v202 = vsub.s32 2, %v201
    %v203 = vrot.slane %v190, %v202
    %v204 = vlaneseq
    %v205 = vshrl.u32 %v204, 7
    %v206 = vsub.s32 3, %v205
    %v207 = vrot.slane %v190, %v206
    %v214 = vunpack.c.l.b16 %v92
    %v215 = vunpack.c.h.b16 %v92
    %v216 = vunpack.c.l.b16 %v93
    %v217 = vpack.c.b16 %v214, %v214
    %v218 = vpack.c.b16 %v215, %v215
    %v219 = vpack.c.b16 %v216, %v216
    %v319 = vunpack.c.l.b16 %v94
    %v320 = vunpack.c.h.b16 %v94
    %v321 = vunpack.c.l.b16 %v95
    %v322 = vunpack.c.h.b16 %v95
    %v323 = vunpack.c.l.b16 %v96
    %v324 = vunpack.c.h.b16 %v96
    %v325 = vunpack.c.l.b16 %v97
    %v326 = vunpack.c.h.b16 %v97
    %v327 = vunpack.c.l.b16 %v98
    %v328 = vunpack.c.h.b16 %v98
    %v329 = vunpack.c.l.b16 %v99
    %v330 = vunpack.c.h.b16 %v99
    %v331 = vunpack.c.l.b16 %v100
    %v332 = vunpack.c.h.b16 %v100
    %v333 = vunpack.c.l.b16 %v101
    %v334 = vunpack.c.h.b16 %v101
    %v335 = vunpack.c.l.b16 %v102
    %v336 = vunpack.c.h.b16 %v102
    %v337 = vunpack.c.l.b16 %v103
    %v338 = vunpack.c.h.b16 %v103
    %v339 = vunpack.c.l.b16 %v104
    %v340 = vunpack.c.h.b16 %v104
    %v341 = vunpack.c.l.b16 %v105
    %v342 = vunpack.c.h.b16 %v105
    %v343 = vunpack.c.l.b16 %v106
    %v344 = vunpack.c.h.b16 %v106
    %v345 = vunpack.c.l.b16 %v107
    %v346 = vunpack.c.h.b16 %v107
    %v347 = vunpack.c.l.b16 %v108
    %v348 = vunpack.c.h.b16 %v108
    %v349 = vunpack.c.l.b16 %v109
    %v350 = vunpack.c.h.b16 %v109
    %v351 = vunpack.c.l.b16 %v110
    %v352 = vunpack.c.h.b16 %v110
    %v353 = vunpack.c.l.b16 %v111
    %v354 = vunpack.c.h.b16 %v111
    %v355 = vunpack.c.l.b16 %v112
    %v356 = vunpack.c.h.b16 %v112
    %v357 = vunpack.c.l.b16 %v113
    %v358 = vunpack.c.h.b16 %v113
    %v359 = vunpack.c.l.b16 %v114
    %v360 = vunpack.c.h.b16 %v114
    %v361 = vunpack.c.l.b16 %v115
    %v362 = vunpack.c.h.b16 %v115
    %v363 = vunpack.c.l.b16 %v116
    %v364 = vunpack.c.h.b16 %v116
    %v365 = vunpack.c.l.b16 %v117
    %v366 = vunpack.c.h.b16 %v117
    %v367 = vunpack.c.l.b16 %v118
    %v368 = vunpack.c.h.b16 %v118
    %v369 = vunpack.c.l.b16 %v119
    %v370 = vunpack.c.h.b16 %v119
    %v371 = vunpack.c.l.b16 %v120
    %v372 = vunpack.c.h.b16 %v120
    %v373 = vunpack.c.l.b16 %v121
    %v374 = vunpack.c.h.b16 %v121
    %v375 = vunpack.c.l.b16 %v122
    %v376 = vunpack.c.h.b16 %v122
    %v377 = vunpack.c.l.b16 %v123
    %v378 = vunpack.c.h.b16 %v123
    %v379 = vunpack.c.l.b16 %v124
    %v380 = vunpack.c.h.b16 %v124
    %v381 = vunpack.c.l.b16 %v125
    %v382 = vunpack.c.h.b16 %v125
    %v383 = vunpack.c.l.b16 %v126
    %v384 = vunpack.c.h.b16 %v126
    %v385 = vunpack.c.l.b16 %v127
    %v386 = vunpack.c.h.b16 %v127
    %v387 = vunpack.c.l.b16 %v128
    %v388 = vunpack.c.h.b16 %v128
    %v389 = vunpack.c.l.b16 %v129
    %v390 = vunpack.c.h.b16 %v129
    %v391 = vunpack.c.l.b16 %v130
    %v392 = vunpack.c.h.b16 %v130
    %v393 = vunpack.c.l.b16 %v131
    %v394 = vunpack.c.h.b16 %v131
    %v395 = vunpack.c.l.b16 %v132
    %v396 = vunpack.c.h.b16 %v132
    %v397 = vunpack.c.l.b16 %v133
    %v398 = vunpack.c.h.b16 %v133
    %v399 = vunpack.c.l.b16 %v134
    %v400 = vunpack.c.h.b16 %v134
    %v401 = vunpack.c.l.b16 %v135
    %v402 = vunpack.c.h.b16 %v135
    %v403 = vunpack.c.l.b16 %v136
    %v404 = vunpack.c.h.b16 %v136
    %v405 = vunpack.c.l.b16 %v137
    %v406 = vunpack.c.h.b16 %v137
    %v407 = vunpack.c.l.b16 %v138
    %v408 = vunpack.c.h.b16 %v138
    %v409 = vunpack.c.l.b16 %v139
    %v410 = vunpack.c.h.b16 %v139
    %v411 = vunpack.c.l.b16 %v140
    %v412 = vunpack.c.h.b16 %v140
    %v413 = vunpack.c.l.b16 %v141
    %v414 = vunpack.c.h.b16 %v141
    %v415 = vunpack.c.l.b16 %v142
    %v416 = vunpack.c.h.b16 %v142
    %v417 = vunpack.c.l.b16 %v143
    %v418 = vunpack.c.h.b16 %v143
    %v419 = vunpack.c.l.b16 %v144
    %v420 = vunpack.c.h.b16 %v144
    %v421 = vunpack.c.l.b16 %v145
    %v422 = vunpack.c.h.b16 %v145
    %v423 = vunpack.c.l.b16 %v146
    %v424 = vunpack.c.h.b16 %v146
    %v425 = vunpack.c.l.b16 %v147
    %v426 = vunpack.c.h.b16 %v147
    %v427 = vunpack.c.l.b16 %v148
    %v428 = vunpack.c.h.b16 %v148
    %v429 = vunpack.c.l.b16 %v149
    %v430 = vunpack.c.h.b16 %v149
    %v431 = vunpack.c.l.b16 %v150
    %v432 = vunpack.c.h.b16 %v150
    %v433 = vunpack.c.l.b16 %v151
    %v434 = vunpack.c.h.b16 %v151
    %v435 = vunpack.c.l.b16 %v152
    %v436 = vunpack.c.h.b16 %v152
    %v437 = vunpack.c.l.b16 %v153
    %v438 = vunpack.c.h.b16 %v153
    %v439 = vunpack.c.l.b16 %v154
    %v440 = vunpack.c.h.b16 %v154
    %v441 = vunpack.c.l.b16 %v155
    %v442 = vunpack.c.h.b16 %v155
    %v443 = vunpack.c.l.b16 %v156
    %v444 = vunpack.c.h.b16 %v156
    %v445 = vunpack.c.l.b16 %v157
    %v446 = vunpack.c.h.b16 %v157
    %v447 = vunpack.c.l.b16 %v158
    %v448 = vunpack.c.h.b16 %v158
    %v449 = vunpack.c.l.b16 %v159
    %v450 = vunpack.c.h.b16 %v159
    %v451 = vunpack.c.l.b16 %v160
    %v452 = vunpack.c.h.b16 %v160
    %v453 = vunpack.c.l.b16 %v161
    %v454 = vunpack.c.h.b16 %v161
    %v455 = vunpack.c.l.b16 %v162
    %v456 = vunpack.c.h.b16 %v162
    %v457 = vunpack.c.l.b16 %v163
    %v458 = vunpack.c.h.b16 %v163
    %v459 = vunpack.c.l.b16 %v164
    %v460 = vunpack.c.h.b16 %v164
    %v461 = vunpack.c.l.b16 %v165
    %v462 = vunpack.c.h.b16 %v165
    %v463 = vunpack.c.l.b16 %v166
    %v464 = vunpack.c.h.b16 %v166
    %v465 = vunpack.c.l.b16 %v167
    %v466 = vunpack.c.h.b16 %v167
    %v467 = vunpack.c.l.b16 %v168
    %v468 = vunpack.c.h.b16 %v168
    %v469 = vunpack.c.l.b16 %v169
    %v470 = vunpack.c.h.b16 %v169
    %v471 = vunpack.c.l.b16 %v170
    %v472 = vunpack.c.h.b16 %v170
    %v473 = vunpack.c.l.b16 %v171
    %v474 = vunpack.c.h.b16 %v171
    %v475 = vunpack.c.l.b16 %v172
    %v476 = vunpack.c.h.b16 %v172
    %v477 = vunpack.c.l.b16 %v173
    %v478 = vunpack.c.h.b16 %v173
    %v479 = vunpack.c.l.b16 %v174
    %v480 = vunpack.c.h.b16 %v174
    %v481 = vunpack.c.l.b16 %v175
    %v482 = vunpack.c.h.b16 %v175
    %v483 = vunpack.c.l.b16 %v176
    %v484 = vunpack.c.h.b16 %v176
    %v485 = vunpack.c.l.b16 %v177
    %v486 = vunpack.c.h.b16 %v177
    %v487 = vunpack.c.l.b16 %v178
    %v488 = vunpack.c.h.b16 %v178
    %v489 = vunpack.c.l.b16 %v179
    %v490 = vunpack.c.h.b16 %v179
    %v491 = vunpack.c.l.b16 %v180
    %v492 = vunpack.c.h.b16 %v180
    %v493 = vunpack.c.l.b16 %v181
    %v494 = vunpack.c.h.b16 %v181
    %v495 = vunpack.c.l.b16 %v182
    %v496 = vunpack.c.h.b16 %v182
    %v497 = vunpack.c.l.b16 %v183
    %v498 = vunpack.c.h.b16 %v183
    %v499 = vunpack.c.l.b16 %v184
    %v500 = vunpack.c.h.b16 %v184
    %v501 = vunpack.c.l.b16 %v185
    %v502 = vunpack.c.h.b16 %v185
    %v503 = vunpack.c.l.b16 %v186
    %v504 = vunpack.c.h.b16 %v186
    %v505 = vunpack.c.l.b16 %v187
    %v506 = vunpack.c.h.b16 %v187
    %v507 = vunpack.c.l.b16 %v188
    %v508 = vunpack.c.h.b16 %v188
    %v509 = vunpack.c.l.b16 %v189
    %v510 = vunpack.c.h.b16 %v189
    %v511 = vpack.c.b16 %v323, %v319
    %v512 = vpack.c.b16 %v324, %v320
    %v513 = vpack.c.b16 %v325, %v321
    %v514 = vpack.c.b16 %v326, %v322
    %v515 = vpack.c.b16 %v331, %v327
    %v516 = vpack.c.b16 %v332, %v328
    %v517 = vpack.c.b16 %v333, %v329
    %v518 = vpack.c.b16 %v334, %v330
    %v519 = vpack.c.b16 %v339, %v335
    %v520 = vpack.c.b16 %v340, %v336
    %v521 = vpack.c.b16 %v341, %v337
    %v522 = vpack.c.b16 %v342, %v338
    %v523 = vpack.c.b16 %v347, %v343
    %v524 = vpack.c.b16 %v348, %v344
    %v525 = vpack.c.b16 %v349, %v345
    %v526 = vpack.c.b16 %v350, %v346
    %v527 = vpack.c.b16 %v355, %v351
    %v528 = vpack.c.b16 %v356, %v352
    %v529 = vpack.c.b16 %v357, %v353
    %v530 = vpack.c.b16 %v358, %v354
    %v531 = vpack.c.b16 %v363, %v359
    %v532 = vpack.c.b16 %v364, %v360
    %v533 = vpack.c.b16 %v365, %v361
    %v534 = vpack.c.b16 %v366, %v362
    %v535 = vpack.c.b16 %v371, %v367
    %v536 = vpack.c.b16 %v372, %v368
    %v537 = vpack.c.b16 %v373, %v369
    %v538 = vpack.c.b16 %v374, %v370
    %v539 = vpack.c.b16 %v379, %v375
    %v540 = vpack.c.b16 %v380, %v376
    %v541 = vpack.c.b16 %v381, %v377
    %v542 = vpack.c.b16 %v382, %v378
    %v543 = vpack.c.b16 %v387, %v383
    %v544 = vpack.c.b16 %v388, %v384
    %v545 = vpack.c.b16 %v389, %v385
    %v546 = vpack.c.b16 %v390, %v386
    %v547 = vpack.c.b16 %v395, %v391
    %v548 = vpack.c.b16 %v396, %v392
    %v549 = vpack.c.b16 %v397, %v393
    %v550 = vpack.c.b16 %v398, %v394
    %v551 = vpack.c.b16 %v403, %v399
    %v552 = vpack.c.b16 %v404, %v400
    %v553 = vpack.c.b16 %v405, %v401
    %v554 = vpack.c.b16 %v406, %v402
    %v555 = vpack.c.b16 %v411, %v407
    %v556 = vpack.c.b16 %v412, %v408
    %v557 = vpack.c.b16 %v413, %v409
    %v558 = vpack.c.b16 %v414, %v410
    %v559 = vpack.c.b16 %v419, %v415
    %v560 = vpack.c.b16 %v420, %v416
    %v561 = vpack.c.b16 %v421, %v417
    %v562 = vpack.c.b16 %v422, %v418
    %v563 = vpack.c.b16 %v427, %v423
    %v564 = vpack.c.b16 %v428, %v424
    %v565 = vpack.c.b16 %v429, %v425
    %v566 = vpack.c.b16 %v430, %v426
    %v567 = vpack.c.b16 %v435, %v431
    %v568 = vpack.c.b16 %v436, %v432
    %v569 = vpack.c.b16 %v437, %v433
    %v570 = vpack.c.b16 %v438, %v434
    %v571 = vpack.c.b16 %v443, %v439
    %v572 = vpack.c.b16 %v444, %v440
    %v573 = vpack.c.b16 %v445, %v441
    %v574 = vpack.c.b16 %v446, %v442
    %v575 = vpack.c.b16 %v451, %v447
    %v576 = vpack.c.b16 %v452, %v448
    %v577 = vpack.c.b16 %v453, %v449
    %v578 = vpack.c.b16 %v454, %v450
    %v579 = vpack.c.b16 %v459, %v455
    %v580 = vpack.c.b16 %v460, %v456
    %v581 = vpack.c.b16 %v461, %v457
    %v582 = vpack.c.b16 %v462, %v458
    %v583 = vpack.c.b16 %v467, %v463
    %v584 = vpack.c.b16 %v468, %v464
    %v585 = vpack.c.b16 %v469, %v465
    %v586 = vpack.c.b16 %v470, %v466
    %v587 = vpack.c.b16 %v475, %v471
    %v588 = vpack.c.b16 %v476, %v472
    %v589 = vpack.c.b16 %v477, %v473
    %v590 = vpack.c.b16 %v478, %v474
    %v591 = vpack.c.b16 %v483, %v479
    %v592 = vpack.c.b16 %v484, %v480
    %v593 = vpack.c.b16 %v485, %v481
    %v594 = vpack.c.b16 %v486, %v482
    %v595 = vpack.c.b16 %v491, %v487
    %v596 = vpack.c.b16 %v492, %v488
    %v597 = vpack.c.b16 %v493, %v489
    %v598 = vpack.c.b16 %v494, %v490
    %v599 = vpack.c.b16 %v499, %v495
    %v600 = vpack.c.b16 %v500, %v496
    %v601 = vpack.c.b16 %v501, %v497
    %v602 = vpack.c.b16 %v502, %v498
    %v603 = vpack.c.b16 %v507, %v503
    %v604 = vpack.c.b16 %v508, %v504
    %v605 = vpack.c.b16 %v509, %v505
    %v606 = vpack.c.b16 %v510, %v506
    %703 = vmatprep.subr.bf16.mxu0 %v540
    %704 = vmatpush1.bf16.msra.mxu0 %v539
    %705 = vmatprep.subr.bf16.mxu0 %v536
    %706 = vmatpush1.bf16.msra.mxu0 %v535
    %707 = vmatprep.subr.bf16.mxu0 %v532
    %708 = vmatpush1.bf16.msra.mxu0 %v531
    %709 = vmatprep.subr.bf16.mxu0 %v528
    %710 = vmatpush1.bf16.msra.mxu0 %v527
    %711 = vmatprep.subr.bf16.mxu0 %v524
    %712 = vmatpush1.bf16.msra.mxu0 %v523
    %713 = vmatprep.subr.bf16.mxu0 %v520
    %714 = vmatpush1.bf16.msra.mxu0 %v519
    %715 = vmatprep.subr.bf16.mxu0 %v516
    %716 = vmatpush1.bf16.msra.mxu0 %v515
    %717 = vmatprep.subr.bf16.mxu0 %v512
    %718 = vmatpush1.bf16.msra.mxu0 %v511
    %719 = vmatprep.subr.bf16.mxu0 %v572
    %720 = vmatpush2.bf16.msra.mxu0 %v571
    %721 = vmatprep.subr.bf16.mxu0 %v568
    %722 = vmatpush2.bf16.msra.mxu0 %v567
    %723 = vmatprep.subr.bf16.mxu0 %v564
    %724 = vmatpush2.bf16.msra.mxu0 %v563
    %725 = vmatprep.subr.bf16.mxu0 %v560
    %726 = vmatpush2.bf16.msra.mxu0 %v559
    %727 = vmatprep.subr.bf16.mxu0 %v556
    %728 = vmatpush2.bf16.msra.mxu0 %v555
    %729 = vmatprep.subr.bf16.mxu0 %v552
    %730 = vmatpush2.bf16.msra.mxu0 %v551
    %731 = vmatprep.subr.bf16.mxu0 %v548
    %732 = vmatpush2.bf16.msra.mxu0 %v547
    %733 = vmatprep.subr.bf16.mxu0 %v544
    %734 = vmatpush2.bf16.msra.mxu0 %v543
    %735 = vmatprep.mubr.bf16.mxu0 %v218
    %736 = vmatmul.mubr.bf16.gmra.mxu0 %v217
    %v737 = vpop.f32.mrf.mxu0
    %v738 = vadd.f32 %v195, %v737
    %v739 = vpop.f32.mrf.mxu0
    %v740 = vadd.f32 %v199, %v739
    %v741 = vpop.f32.mrf.mxu0
    %v742 = vpop.f32.mrf.mxu0
    %743 = vdwg.mxu0
    %744 = vmatprep.subr.bf16.mxu0 %v604
    %745 = vmatpush1.bf16.msra.mxu0 %v603
    %746 = vmatprep.subr.bf16.mxu0 %v600
    %747 = vmatpush1.bf16.msra.mxu0 %v599
    %748 = vmatprep.subr.bf16.mxu0 %v596
    %749 = vmatpush1.bf16.msra.mxu0 %v595
    %750 = vmatprep.subr.bf16.mxu0 %v592
    %751 = vmatpush1.bf16.msra.mxu0 %v591
    %752 = vmatprep.subr.bf16.mxu0 %v588
    %753 = vmatpush1.bf16.msra.mxu0 %v587
    %754 = vmatprep.subr.bf16.mxu0 %v584
    %755 = vmatpush1.bf16.msra.mxu0 %v583
    %756 = vmatprep.subr.bf16.mxu0 %v580
    %757 = vmatpush1.bf16.msra.mxu0 %v579
    %758 = vmatprep.subr.bf16.mxu0 %v576
    %759 = vmatpush1.bf16.msra.mxu0 %v575
    %760 = vmatprep.subr.bf16.mxu0 0
    %761 = vmatpush2.bf16.msra.mxu0 0
    %762 = vmatprep.subr.bf16.mxu0 0
    %763 = vmatpush2.bf16.msra.mxu0 0
    %764 = vmatprep.subr.bf16.mxu0 0
    %765 = vmatpush2.bf16.msra.mxu0 0
    %766 = vmatprep.subr.bf16.mxu0 0
    %767 = vmatpush2.bf16.msra.mxu0 0
    %768 = vmatprep.subr.bf16.mxu0 0
    %769 = vmatpush2.bf16.msra.mxu0 0
    %770 = vmatprep.subr.bf16.mxu0 0
    %771 = vmatpush2.bf16.msra.mxu0 0
    %772 = vmatprep.subr.bf16.mxu0 0
    %773 = vmatpush2.bf16.msra.mxu0 0
    %774 = vmatprep.subr.bf16.mxu0 0
    %775 = vmatpush2.bf16.msra.mxu0 0
    %776 = vmatprep.mubr.bf16.mxu0 0
    %777 = vmatmul.mubr.bf16.gmra.mxu0 %v219
    %v778 = vpop.f32.mrf.mxu0
    %v779 = vadd.f32 %v738, %v778
    %v780 = vpop.f32.mrf.mxu0
    %v781 = vadd.f32 %v740, %v780
    %v782 = vpop.f32.mrf.mxu0
    %v783 = vpop.f32.mrf.mxu0
    %784 = vdwg.mxu0
    %785 = vmatprep.subr.bf16.mxu0 %v542
    %786 = vmatpush1.bf16.msra.mxu0 %v541
    %787 = vmatprep.subr.bf16.mxu0 %v538
    %788 = vmatpush1.bf16.msra.mxu0 %v537
    %789 = vmatprep.subr.bf16.mxu0 %v534
    %790 = vmatpush1.bf16.msra.mxu0 %v533
    %791 = vmatprep.subr.bf16.mxu0 %v530
    %792 = vmatpush1.bf16.msra.mxu0 %v529
    %793 = vmatprep.subr.bf16.mxu0 %v526
    %794 = vmatpush1.bf16.msra.mxu0 %v525
    %795 = vmatprep.subr.bf16.mxu0 %v522
    %796 = vmatpush1.bf16.msra.mxu0 %v521
    %797 = vmatprep.subr.bf16.mxu0 %v518
    %798 = vmatpush1.bf16.msra.mxu0 %v517
    %799 = vmatprep.subr.bf16.mxu0 %v514
    %800 = vmatpush1.bf16.msra.mxu0 %v513
    %801 = vmatprep.subr.bf16.mxu0 %v574
    %802 = vmatpush2.bf16.msra.mxu0 %v573
    %803 = vmatprep.subr.bf16.mxu0 %v570
    %804 = vmatpush2.bf16.msra.mxu0 %v569
    %805 = vmatprep.subr.bf16.mxu0 %v566
    %806 = vmatpush2.bf16.msra.mxu0 %v565
    %807 = vmatprep.subr.bf16.mxu0 %v562
    %808 = vmatpush2.bf16.msra.mxu0 %v561
    %809 = vmatprep.subr.bf16.mxu0 %v558
    %810 = vmatpush2.bf16.msra.mxu0 %v557
    %811 = vmatprep.subr.bf16.mxu0 %v554
    %812 = vmatpush2.bf16.msra.mxu0 %v553
    %813 = vmatprep.subr.bf16.mxu0 %v550
    %814 = vmatpush2.bf16.msra.mxu0 %v549
    %815 = vmatprep.subr.bf16.mxu0 %v546
    %816 = vmatpush2.bf16.msra.mxu0 %v545
    %817 = vmatprep.mubr.bf16.mxu0 %v218
    %818 = vmatmul.mubr.bf16.gmra.mxu0 %v217
    %v819 = vpop.f32.mrf.mxu0
    %v820 = vadd.f32 %v203, %v819
    %v821 = vpop.f32.mrf.mxu0
    %v822 = vadd.f32 %v207, %v821
    %v823 = vpop.f32.mrf.mxu0
    %v824 = vpop.f32.mrf.mxu0
    %825 = vdwg.mxu0
    %826 = vmatprep.subr.bf16.mxu0 %v606
    %827 = vmatpush1.bf16.msra.mxu0 %v605
    %828 = vmatprep.subr.bf16.mxu0 %v602
    %829 = vmatpush1.bf16.msra.mxu0 %v601
    %830 = vmatprep.subr.bf16.mxu0 %v598
    %831 = vmatpush1.bf16.msra.mxu0 %v597
    %832 = vmatprep.subr.bf16.mxu0 %v594
    %833 = vmatpush1.bf16.msra.mxu0 %v593
    %834 = vmatprep.subr.bf16.mxu0 %v590
    %835 = vmatpush1.bf16.msra.mxu0 %v589
    %836 = vmatprep.subr.bf16.mxu0 %v586
    %837 = vmatpush1.bf16.msra.mxu0 %v585
    %838 = vmatprep.subr.bf16.mxu0 %v582
    %839 = vmatpush1.bf16.msra.mxu0 %v581
    %840 = vmatprep.subr.bf16.mxu0 %v578
    %841 = vmatpush1.bf16.msra.mxu0 %v577
    %842 = vmatprep.subr.bf16.mxu0 0
    %843 = vmatpush2.bf16.msra.mxu0 0
    %844 = vmatprep.subr.bf16.mxu0 0
    %845 = vmatpush2.bf16.msra.mxu0 0
    %846 = vmatprep.subr.bf16.mxu0 0
    %847 = vmatpush2.bf16.msra.mxu0 0
    %848 = vmatprep.subr.bf16.mxu0 0
    %849 = vmatpush2.bf16.msra.mxu0 0
    %850 = vmatprep.subr.bf16.mxu0 0
    %851 = vmatpush2.bf16.msra.mxu0 0
    %852 = vmatprep.subr.bf16.mxu0 0
    %853 = vmatpush2.bf16.msra.mxu0 0
    %854 = vmatprep.subr.bf16.mxu0 0
    %855 = vmatpush2.bf16.msra.mxu0 0
    %856 = vmatprep.subr.bf16.mxu0 0
    %857 = vmatpush2.bf16.msra.mxu0 0
    %858 = vmatprep.mubr.bf16.mxu0 0
    %859 = vmatmul.mubr.bf16.gmra.mxu0 %v219
    %v860 = vpop.f32.mrf.mxu0
    %v861 = vadd.f32 %v820, %v860
    %v862 = vpop.f32.mrf.mxu0
    %v863 = vadd.f32 %v822, %v862
    %v864 = vpop.f32.mrf.mxu0
    %v865 = vpop.f32.mrf.mxu0
    %866 = vdwg.mxu0
    %v867 = vmax.f32 %v779, 0.0
    %v868 = vmax.f32 %v781, 0.0
    %v869 = vmax.f32 %v861, 0.0
    %v870 = vmax.f32 %v863, 0.0
    %v871 = vpack.c.bf16 %v867, %v867
    %v872 = vpack.c.bf16 %v868, %v868
    %v873 = vpack.c.bf16 %v869, %v869
    %v874 = vpack.c.bf16 %v870, %v870
    %v875 = vld [vmem:[#allocation8] sm:$0xf]
    %v876 = vld [vmem:[#allocation8 + $0x4] sm:$0xf]
    %v877 = vld [vmem:[#allocation8 + $0x8] sm:$0xf]
    %v878 = vld [vmem:[#allocation8 + $0xc] sm:$0xf]
    %v879 = vld [vmem:[#allocation8 + $0x10] sm:$0xf]
    %v880 = vld [vmem:[#allocation8 + $0x14] sm:$0xf]
    %v881 = vld [vmem:[#allocation8 + $0x18] sm:$0xf]
    %v882 = vld [vmem:[#allocation8 + $0x1c] sm:$0xf]
    %v883 = vld [vmem:[#allocation8 + $0x20] sm:$0xf]
    %v884 = vld [vmem:[#allocation8 + $0x24] sm:$0xf]
    %v885 = vld [vmem:[#allocation8 + $0x28] sm:$0xf]
    %v886 = vld [vmem:[#allocation8 + $0x2c] sm:$0xf]
    %v887 = vld [vmem:[#allocation8 + $0x30] sm:$0xf]
    %v888 = vld [vmem:[#allocation8 + $0x34] sm:$0xf]
    %v889 = vld [vmem:[#allocation8 + $0x38] sm:$0xf]
    %v890 = vld [vmem:[#allocation8 + $0x3c] sm:$0xf]
    %v891 = vld [vmem:[#allocation8 + $0x40] sm:$0xf]
    %v892 = vld [vmem:[#allocation8 + $0x44] sm:$0xf]
    %v893 = vld [vmem:[#allocation8 + $0x48] sm:$0xf]
    %v894 = vld [vmem:[#allocation8 + $0x4c] sm:$0xf]
    %v895 = vld [vmem:[#allocation8 + $0x50] sm:$0xf]
    %v896 = vld [vmem:[#allocation8 + $0x54] sm:$0xf]
    %v897 = vld [vmem:[#allocation8 + $0x58] sm:$0xf]
    %v898 = vld [vmem:[#allocation8 + $0x5c] sm:$0xf]
    %v899 = vld [vmem:[#allocation8 + $0x60] sm:$0xf]
    %v900 = vld [vmem:[#allocation8 + $0x64] sm:$0xf]
    %v901 = vld [vmem:[#allocation8 + $0x68] sm:$0xf]
    %v902 = vld [vmem:[#allocation8 + $0x6c] sm:$0xf]
    %v903 = vld [vmem:[#allocation8 + $0x70] sm:$0xf]
    %v904 = vld [vmem:[#allocation8 + $0x74] sm:$0xf]
    %v905 = vld [vmem:[#allocation8 + $0x78] sm:$0xf]
    %v906 = vld [vmem:[#allocation8 + $0x7c] sm:$0xf]
    %v907 = vld [vmem:[#allocation8 + $0x80] sm:$0xf]
    %v908 = vld [vmem:[#allocation8 + $0x84] sm:$0xf]
    %v909 = vld [vmem:[#allocation8 + $0x88] sm:$0xf]
    %v910 = vld [vmem:[#allocation8 + $0x8c] sm:$0xf]
    %v911 = vld [vmem:[#allocation8 + $0x90] sm:$0xf]
    %v912 = vld [vmem:[#allocation8 + $0x94] sm:$0xf]
    %v913 = vld [vmem:[#allocation8 + $0x98] sm:$0xf]
    %v914 = vld [vmem:[#allocation8 + $0x9c] sm:$0xf]
    %v915 = vld [vmem:[#allocation8 + $0xa0] sm:$0xf]
    %v916 = vld [vmem:[#allocation8 + $0xa4] sm:$0xf]
    %v917 = vld [vmem:[#allocation8 + $0xa8] sm:$0xf]
    %v918 = vld [vmem:[#allocation8 + $0xac] sm:$0xf]
    %v919 = vld [vmem:[#allocation8 + $0xb0] sm:$0xf]
    %v920 = vld [vmem:[#allocation8 + $0xb4] sm:$0xf]
    %v921 = vld [vmem:[#allocation8 + $0xb8] sm:$0xf]
    %v922 = vld [vmem:[#allocation8 + $0xbc] sm:$0xf]
    %v923 = vld [vmem:[#allocation8 + $0xc0] sm:$0xf]
    %v924 = vld [vmem:[#allocation8 + $0xc4] sm:$0xf]
    %v925 = vld [vmem:[#allocation8 + $0xc8] sm:$0xf]
    %v926 = vld [vmem:[#allocation8 + $0xcc] sm:$0xf]
    %v927 = vld [vmem:[#allocation8 + $0xd0] sm:$0xf]
    %v928 = vld [vmem:[#allocation8 + $0xd4] sm:$0xf]
    %v929 = vld [vmem:[#allocation8 + $0xd8] sm:$0xf]
    %v930 = vld [vmem:[#allocation8 + $0xdc] sm:$0xf]
    %v931 = vld [vmem:[#allocation8 + $0xe0] sm:$0xf]
    %v932 = vld [vmem:[#allocation8 + $0xe4] sm:$0xf]
    %v933 = vld [vmem:[#allocation8 + $0xe8] sm:$0xf]
    %v934 = vld [vmem:[#allocation8 + $0xec] sm:$0xf]
    %v935 = vld [vmem:[#allocation8 + $0xf0] sm:$0xf]
    %v936 = vld [vmem:[#allocation8 + $0xf4] sm:$0xf]
    %v937 = vld [vmem:[#allocation8 + $0xf8] sm:$0xf]
    %v938 = vld [vmem:[#allocation8 + $0xfc] sm:$0xf]
    %v939 = vld [vmem:[%s4] sm:$0x1]
    %v941 = vlaneseq
    %v942 = vshrl.u32 %v941, 7
    %v943 = vsub.s32 0, %v942
    %v944 = vrot.slane %v939, %v943
    %v1010 = vunpack.c.l.b16 %v875
    %v1011 = vunpack.c.l.b16 %v876
    %v1012 = vunpack.c.l.b16 %v877
    %v1013 = vunpack.c.l.b16 %v878
    %v1014 = vunpack.c.l.b16 %v879
    %v1015 = vunpack.c.l.b16 %v880
    %v1016 = vunpack.c.l.b16 %v881
    %v1017 = vunpack.c.l.b16 %v882
    %v1018 = vunpack.c.l.b16 %v883
    %v1019 = vunpack.c.l.b16 %v884
    %v1020 = vunpack.c.l.b16 %v885
    %v1021 = vunpack.c.l.b16 %v886
    %v1022 = vunpack.c.l.b16 %v887
    %v1023 = vunpack.c.l.b16 %v888
    %v1024 = vunpack.c.l.b16 %v889
    %v1025 = vunpack.c.l.b16 %v890
    %v1026 = vunpack.c.l.b16 %v891
    %v1027 = vunpack.c.l.b16 %v892
    %v1028 = vunpack.c.l.b16 %v893
    %v1029 = vunpack.c.l.b16 %v894
    %v1030 = vunpack.c.l.b16 %v895
    %v1031 = vunpack.c.l.b16 %v896
    %v1032 = vunpack.c.l.b16 %v897
    %v1033 = vunpack.c.l.b16 %v898
    %v1034 = vunpack.c.l.b16 %v899
    %v1035 = vunpack.c.l.b16 %v900
    %v1036 = vunpack.c.l.b16 %v901
    %v1037 = vunpack.c.l.b16 %v902
    %v1038 = vunpack.c.l.b16 %v903
    %v1039 = vunpack.c.l.b16 %v904
    %v1040 = vunpack.c.l.b16 %v905
    %v1041 = vunpack.c.l.b16 %v906
    %v1042 = vunpack.c.l.b16 %v907
    %v1043 = vunpack.c.l.b16 %v908
    %v1044 = vunpack.c.l.b16 %v909
    %v1045 = vunpack.c.l.b16 %v910
    %v1046 = vunpack.c.l.b16 %v911
    %v1047 = vunpack.c.l.b16 %v912
    %v1048 = vunpack.c.l.b16 %v913
    %v1049 = vunpack.c.l.b16 %v914
    %v1050 = vunpack.c.l.b16 %v915
    %v1051 = vunpack.c.l.b16 %v916
    %v1052 = vunpack.c.l.b16 %v917
    %v1053 = vunpack.c.l.b16 %v918
    %v1054 = vunpack.c.l.b16 %v919
    %v1055 = vunpack.c.l.b16 %v920
    %v1056 = vunpack.c.l.b16 %v921
    %v1057 = vunpack.c.l.b16 %v922
    %v1058 = vunpack.c.l.b16 %v923
    %v1059 = vunpack.c.l.b16 %v924
    %v1060 = vunpack.c.l.b16 %v925
    %v1061 = vunpack.c.l.b16 %v926
    %v1062 = vunpack.c.l.b16 %v927
    %v1063 = vunpack.c.l.b16 %v928
    %v1064 = vunpack.c.l.b16 %v929
    %v1065 = vunpack.c.l.b16 %v930
    %v1066 = vunpack.c.l.b16 %v931
    %v1067 = vunpack.c.l.b16 %v932
    %v1068 = vunpack.c.l.b16 %v933
    %v1069 = vunpack.c.l.b16 %v934
    %v1070 = vunpack.c.l.b16 %v935
    %v1071 = vunpack.c.l.b16 %v936
    %v1072 = vunpack.c.l.b16 %v937
    %v1073 = vunpack.c.l.b16 %v938
    %v1074 = vpack.c.b16 %v1011, %v1010
    %v1075 = vpack.c.b16 %v1013, %v1012
    %v1076 = vpack.c.b16 %v1015, %v1014
    %v1077 = vpack.c.b16 %v1017, %v1016
    %v1078 = vpack.c.b16 %v1019, %v1018
    %v1079 = vpack.c.b16 %v1021, %v1020
    %v1080 = vpack.c.b16 %v1023, %v1022
    %v1081 = vpack.c.b16 %v1025, %v1024
    %v1082 = vpack.c.b16 %v1027, %v1026
    %v1083 = vpack.c.b16 %v1029, %v1028
    %v1084 = vpack.c.b16 %v1031, %v1030
    %v1085 = vpack.c.b16 %v1033, %v1032
    %v1086 = vpack.c.b16 %v1035, %v1034
    %v1087 = vpack.c.b16 %v1037, %v1036
    %v1088 = vpack.c.b16 %v1039, %v1038
    %v1089 = vpack.c.b16 %v1041, %v1040
    %v1090 = vpack.c.b16 %v1043, %v1042
    %v1091 = vpack.c.b16 %v1045, %v1044
    %v1092 = vpack.c.b16 %v1047, %v1046
    %v1093 = vpack.c.b16 %v1049, %v1048
    %v1094 = vpack.c.b16 %v1051, %v1050
    %v1095 = vpack.c.b16 %v1053, %v1052
    %v1096 = vpack.c.b16 %v1055, %v1054
    %v1097 = vpack.c.b16 %v1057, %v1056
    %v1098 = vpack.c.b16 %v1059, %v1058
    %v1099 = vpack.c.b16 %v1061, %v1060
    %v1100 = vpack.c.b16 %v1063, %v1062
    %v1101 = vpack.c.b16 %v1065, %v1064
    %v1102 = vpack.c.b16 %v1067, %v1066
    %v1103 = vpack.c.b16 %v1069, %v1068
    %v1104 = vpack.c.b16 %v1071, %v1070
    %v1105 = vpack.c.b16 %v1073, %v1072
    %1138 = vmatprep.subr.bf16.mxu0 0
    %1139 = vmatpush1.bf16.msra.mxu0 %v1081
    %1140 = vmatprep.subr.bf16.mxu0 0
    %1141 = vmatpush1.bf16.msra.mxu0 %v1080
    %1142 = vmatprep.subr.bf16.mxu0 0
    %1143 = vmatpush1.bf16.msra.mxu0 %v1079
    %1144 = vmatprep.subr.bf16.mxu0 0
    %1145 = vmatpush1.bf16.msra.mxu0 %v1078
    %1146 = vmatprep.subr.bf16.mxu0 0
    %1147 = vmatpush1.bf16.msra.mxu0 %v1077
    %1148 = vmatprep.subr.bf16.mxu0 0
    %1149 = vmatpush1.bf16.msra.mxu0 %v1076
    %1150 = vmatprep.subr.bf16.mxu0 0
    %1151 = vmatpush1.bf16.msra.mxu0 %v1075
    %1152 = vmatprep.subr.bf16.mxu0 0
    %1153 = vmatpush1.bf16.msra.mxu0 %v1074
    %1154 = vmatprep.subr.bf16.mxu0 0
    %1155 = vmatpush2.bf16.msra.mxu0 %v1089
    %1156 = vmatprep.subr.bf16.mxu0 0
    %1157 = vmatpush2.bf16.msra.mxu0 %v1088
    %1158 = vmatprep.subr.bf16.mxu0 0
    %1159 = vmatpush2.bf16.msra.mxu0 %v1087
    %1160 = vmatprep.subr.bf16.mxu0 0
    %1161 = vmatpush2.bf16.msra.mxu0 %v1086
    %1162 = vmatprep.subr.bf16.mxu0 0
    %1163 = vmatpush2.bf16.msra.mxu0 %v1085
    %1164 = vmatprep.subr.bf16.mxu0 0
    %1165 = vmatpush2.bf16.msra.mxu0 %v1084
    %1166 = vmatprep.subr.bf16.mxu0 0
    %1167 = vmatpush2.bf16.msra.mxu0 %v1083
    %1168 = vmatprep.subr.bf16.mxu0 0
    %1169 = vmatpush2.bf16.msra.mxu0 %v1082
    %1170 = vmatprep.mubr.bf16.mxu0 %v872
    %1171 = vmatmul.mubr.bf16.gmra.mxu0 %v871
    %v1172 = vpop.f32.mrf.mxu0
    %v1173 = vadd.f32 %v944, %v1172
    %v1174 = vpop.f32.mrf.mxu0
    %v1175 = vpop.f32.mrf.mxu0
    %v1176 = vpop.f32.mrf.mxu0
    %1177 = vdwg.mxu0
    %1178 = vmatprep.subr.bf16.mxu0 0
    %1179 = vmatpush1.bf16.msra.mxu0 %v1097
    %1180 = vmatprep.subr.bf16.mxu0 0
    %1181 = vmatpush1.bf16.msra.mxu0 %v1096
    %1182 = vmatprep.subr.bf16.mxu0 0
    %1183 = vmatpush1.bf16.msra.mxu0 %v1095
    %1184 = vmatprep.subr.bf16.mxu0 0
    %1185 = vmatpush1.bf16.msra.mxu0 %v1094
    %1186 = vmatprep.subr.bf16.mxu0 0
    %1187 = vmatpush1.bf16.msra.mxu0 %v1093
    %1188 = vmatprep.subr.bf16.mxu0 0
    %1189 = vmatpush1.bf16.msra.mxu0 %v1092
    %1190 = vmatprep.subr.bf16.mxu0 0
    %1191 = vmatpush1.bf16.msra.mxu0 %v1091
    %1192 = vmatprep.subr.bf16.mxu0 0
    %1193 = vmatpush1.bf16.msra.mxu0 %v1090
    %1194 = vmatprep.subr.bf16.mxu0 0
    %1195 = vmatpush2.bf16.msra.mxu0 %v1105
    %1196 = vmatprep.subr.bf16.mxu0 0
    %1197 = vmatpush2.bf16.msra.mxu0 %v1104
    %1198 = vmatprep.subr.bf16.mxu0 0
    %1199 = vmatpush2.bf16.msra.mxu0 %v1103
    %1200 = vmatprep.subr.bf16.mxu0 0
    %1201 = vmatpush2.bf16.msra.mxu0 %v1102
    %1202 = vmatprep.subr.bf16.mxu0 0
    %1203 = vmatpush2.bf16.msra.mxu0 %v1101
    %1204 = vmatprep.subr.bf16.mxu0 0
    %1205 = vmatpush2.bf16.msra.mxu0 %v1100
    %1206 = vmatprep.subr.bf16.mxu0 0
    %1207 = vmatpush2.bf16.msra.mxu0 %v1099
    %1208 = vmatprep.subr.bf16.mxu0 0
    %1209 = vmatpush2.bf16.msra.mxu0 %v1098
    %1210 = vmatprep.mubr.bf16.mxu0 %v874
    %1211 = vmatmul.mubr.bf16.gmra.mxu0 %v873
    %v1212 = vpop.f32.mrf.mxu0
    %v1213 = vadd.f32 %v1173, %v1212
    %v1214 = vpop.f32.mrf.mxu0
    %v1215 = vpop.f32.mrf.mxu0
    %v1216 = vpop.f32.mrf.mxu0
    %1217 = vdwg.mxu0
    %v1218 = vmax.f32 %v1213, 0.0
    %v1219 = vpack.c.bf16 %v1218, %v1218
    %v1220 = vld [vmem:[#allocation10] sm:$0xf]
    %v1221 = vld [vmem:[#allocation10 + $0x4] sm:$0xf]
    %v1222 = vld [vmem:[#allocation10 + $0x8] sm:$0xf]
    %v1223 = vld [vmem:[#allocation10 + $0xc] sm:$0xf]
    %v1224 = vld [vmem:[#allocation10 + $0x10] sm:$0xf]
    %v1225 = vld [vmem:[#allocation10 + $0x14] sm:$0xf]
    %v1226 = vld [vmem:[#allocation10 + $0x18] sm:$0xf]
    %v1227 = vld [vmem:[#allocation10 + $0x1c] sm:$0xf]
    %v1228 = vld [vmem:[#allocation10 + $0x20] sm:$0xf]
    %v1229 = vld [vmem:[#allocation10 + $0x24] sm:$0xf]
    %v1230 = vld [vmem:[#allocation10 + $0x28] sm:$0xf]
    %v1231 = vld [vmem:[#allocation10 + $0x2c] sm:$0xf]
    %v1232 = vld [vmem:[#allocation10 + $0x30] sm:$0xf]
    %v1233 = vld [vmem:[#allocation10 + $0x34] sm:$0xf]
    %v1234 = vld [vmem:[#allocation10 + $0x38] sm:$0xf]
    %v1235 = vld [vmem:[#allocation10 + $0x3c] sm:$0xf]
    %v1236 = vld [vmem:[%s6] sm:$0x1]
    %v1238 = vlaneseq
    %v1239 = vshrl.u32 %v1238, 7
    %v1240 = vsub.s32 0, %v1239
    %v1241 = vrot.slane %v1236, %v1240
    %v1259 = vunpack.c.l.b16 %v1220
    %v1260 = vunpack.c.l.b16 %v1221
    %v1261 = vunpack.c.l.b16 %v1222
    %v1262 = vunpack.c.l.b16 %v1223
    %v1263 = vunpack.c.l.b16 %v1224
    %v1264 = vunpack.c.l.b16 %v1225
    %v1265 = vunpack.c.l.b16 %v1226
    %v1266 = vunpack.c.l.b16 %v1227
    %v1267 = vunpack.c.l.b16 %v1228
    %v1268 = vunpack.c.l.b16 %v1229
    %v1269 = vunpack.c.l.b16 %v1230
    %v1270 = vunpack.c.l.b16 %v1231
    %v1271 = vunpack.c.l.b16 %v1232
    %v1272 = vunpack.c.l.b16 %v1233
    %v1273 = vunpack.c.l.b16 %v1234
    %v1274 = vunpack.c.l.b16 %v1235
    %v1275 = vpack.c.b16 %v1260, %v1259
    %v1276 = vpack.c.b16 %v1262, %v1261
    %v1277 = vpack.c.b16 %v1264, %v1263
    %v1278 = vpack.c.b16 %v1266, %v1265
    %v1279 = vpack.c.b16 %v1268, %v1267
    %v1280 = vpack.c.b16 %v1270, %v1269
    %v1281 = vpack.c.b16 %v1272, %v1271
    %v1282 = vpack.c.b16 %v1274, %v1273
    %1291 = vmatprep.subr.bf16.mxu0 0
    %1292 = vmatpush1.bf16.msra.mxu0 %v1282
    %1293 = vmatprep.subr.bf16.mxu0 0
    %1294 = vmatpush1.bf16.msra.mxu0 %v1281
    %1295 = vmatprep.subr.bf16.mxu0 0
    %1296 = vmatpush1.bf16.msra.mxu0 %v1280
    %1297 = vmatprep.subr.bf16.mxu0 0
    %1298 = vmatpush1.bf16.msra.mxu0 %v1279
    %1299 = vmatprep.subr.bf16.mxu0 0
    %1300 = vmatpush1.bf16.msra.mxu0 %v1278
    %1301 = vmatprep.subr.bf16.mxu0 0
    %1302 = vmatpush1.bf16.msra.mxu0 %v1277
    %1303 = vmatprep.subr.bf16.mxu0 0
    %1304 = vmatpush1.bf16.msra.mxu0 %v1276
    %1305 = vmatprep.subr.bf16.mxu0 0
    %1306 = vmatpush1.bf16.msra.mxu0 %v1275
    %1307 = vmatprep.subr.bf16.mxu0 0
    %1308 = vmatpush2.bf16.msra.mxu0 0
    %1309 = vmatprep.subr.bf16.mxu0 0
    %1310 = vmatpush2.bf16.msra.mxu0 0
    %1311 = vmatprep.subr.bf16.mxu0 0
    %1312 = vmatpush2.bf16.msra.mxu0 0
    %1313 = vmatprep.subr.bf16.mxu0 0
    %1314 = vmatpush2.bf16.msra.mxu0 0
    %1315 = vmatprep.subr.bf16.mxu0 0
    %1316 = vmatpush2.bf16.msra.mxu0 0
    %1317 = vmatprep.subr.bf16.mxu0 0
    %1318 = vmatpush2.bf16.msra.mxu0 0
    %1319 = vmatprep.subr.bf16.mxu0 0
    %1320 = vmatpush2.bf16.msra.mxu0 0
    %1321 = vmatprep.subr.bf16.mxu0 0
    %1322 = vmatpush2.bf16.msra.mxu0 0
    %1323 = vmatprep.mubr.bf16.mxu0 0
    %1324 = vmatmul.mubr.bf16.gmra.mxu0 %v1219
    %v1325 = vpop.f32.mrf.mxu0
    %v1326 = vadd.f32 %v1241, %v1325
    %v1327 = vpop.f32.mrf.mxu0
    %v1328 = vpop.f32.mrf.mxu0
    %v1329 = vpop.f32.mrf.mxu0
    %1330 = vdwg.mxu0
    %1331 = vmax.xlane.f32.xlu0 %v1326
    %v1332 = vpop.xlane.xlu0 %1331
    %v1333 = vsub.f32 %v1326, %v1332
    %v1334 = vmul.f32 %v1333, 1.442695
    %v1335 = vpow.pop %v1334
    %1336 = vadd.xlane.f32.xlu0 %v1335
    %v1337 = vpop.xlane.xlu0 %1336
    %v1338 = vrcp.pop %v1337
    %v1339 = vmul.f32 %v1335, %v1338
    %1340 = vst [vmem:[#allocation11] sm:$0xff] %v1339
    // Predicated region
    $region50: #{tpu_custom_call.1} parent=1 // pred_check
      _
    $region51: #{tpu_custom_call.1} parent=1 // pred_check_branch
      %1342 = sbr.rel (0) target = $region53
    $region52: #{tpu_custom_call.1} parent=1 // pred_region
      %s1344 = ssub.s32 128, 128
      %1345 = vsyncadd [#allocation4], %s1344
      %s1347 = sshll.u32 [#allocation11], 4
      %s1348 = int_to_ptr.vmem [resolvable:$true] %s1347
      %1350 = dma.vmem_to_hbm [thread:$0]  %s1348, 128, %s7, [#allocation4]
    $region53: #{tpu_custom_call.1} parent=1 // pred_fallthru
      _
    // Predicated region
    $region54: #{tpu_custom_call.1} parent=1 // pred_check
      _
    $region55: #{tpu_custom_call.1} parent=1 // pred_check_branch
      %1352 = sbr.rel (0) target = $region57
    $region56: #{tpu_custom_call.1} parent=1 // pred_region
      %1353 = dma.done [#allocation4], 128
    $region57: #{tpu_custom_call.1} parent=1 // pred_fallthru
      _
    %1354 = vsyncpa [#allocation3], 1
    %1355 = vsyncpa [#allocation6], 1
    %1356 = vsyncpa [#allocation9], 1
    %1357 = vsyncpa [#allocation4], 1

</llo_original>
